<compile_context>
chip_gen: v5e
topology: v5e:2x2
jax: 0.10.0
libtpu: 0.0.40
codegen_flags: <defaults>
</compile_context>

<pallas_src>
import jax
import jax.numpy as jnp
from jax.experimental import pallas as pl
from jax.experimental.pallas import tpu as pltpu

LANE = 128     # lane width: last-dim block sizes must be x128 or full-dim
SUBLANE = 8    # f32 sublane width: second-to-last-dim multiples of 8


def _round_up(x: int, m: int) -> int:
    return (x + m - 1) // m * m


# --------------------------------------------------------------------------
# Kernel
# --------------------------------------------------------------------------
def f1_kernel(x_ref, w0_ref, b0_ref, w1_ref, b1_ref, o_ref):
    """Fused relu(x @ W0 + b0) @ W1 + b1 on one (block_n, d) batch tile.

    x arrives as f32 straight from HBM and is cast to bf16 in-register for the
    first (large) matmul; accumulation, bias add, ReLU and the second (small-k)
    matmul are f32.
    """
    x_bf16 = x_ref[...].astype(jnp.bfloat16)                    # VPU pack, cheap
    h = jnp.dot(x_bf16, w0_ref[...], preferred_element_type=jnp.float32)
    h = jnp.maximum(h + b0_ref[...], 0.0)                       # f32 bias + ReLU
    out = jnp.dot(h, w1_ref[...], preferred_element_type=jnp.float32)  # f32, tiny
    o_ref[...] = (out + b1_ref[...]).astype(o_ref.dtype)


# --------------------------------------------------------------------------
# One-time capability / hardware queries
# --------------------------------------------------------------------------
_BUFFERED1_SUPPORTED = None


def _probe_copy_kernel(x_ref, o_ref):
    o_ref[...] = x_ref[...]


def _buffered1_supported() -> bool:
    """One-time probe: does this JAX/Mosaic accept pipeline_mode=pl.Buffered(1)?"""
    global _BUFFERED1_SUPPORTED
    if _BUFFERED1_SUPPORTED is None:
        try:
            x = jnp.zeros((SUBLANE, LANE), jnp.float32)
            out = pl.pallas_call(
                _probe_copy_kernel,
                out_shape=jax.ShapeDtypeStruct((SUBLANE, LANE), jnp.float32),
                grid=(1,),
                in_specs=[pl.BlockSpec((SUBLANE, LANE), lambda i: (0, 0),
                                       pipeline_mode=pl.Buffered(1))],
                out_specs=pl.BlockSpec((SUBLANE, LANE), lambda i: (0, 0)),
            )(x)
            jax.block_until_ready(out)
            _BUFFERED1_SUPPORTED = True
        except Exception:
            _BUFFERED1_SUPPORTED = False
    return _BUFFERED1_SUPPORTED


def _vmem_capacity_bytes() -> int:
    try:
        return int(pltpu.get_tpu_info().vmem_capacity_bytes)
    except Exception:
        return 64 * 1024 * 1024        # conservative (v7x per-TC VMEM)


def _tensorcores_per_chip() -> int:
    try:
        kind = jax.devices()[0].device_kind.lower()
    except Exception:
        return 1
    return 2 if ("v7" in kind or "v4" in kind) else 1


# --------------------------------------------------------------------------
# One-time parameter prep (hoist out of the per-call path)
# --------------------------------------------------------------------------
def prepare_f1_params(w0, b0, w1, b1):
    """Pad feature dims to lane multiples and cast the large first-layer weight
    to bf16.  Call ONCE per parameter set (outside the forward loop)."""
    d, h = w0.shape
    k = w1.shape[1]
    h_pad = _round_up(h, LANE)
    k_pad = _round_up(k, LANE)
    # d stays UNPADDED: block last dim == full array dim is legal and matches x.
    w0_p = jnp.zeros((d, h_pad), jnp.bfloat16).at[:, :h].set(w0.astype(jnp.bfloat16))
    b0_p = jnp.zeros((1, h_pad), jnp.float32).at[0, :h].set(b0.astype(jnp.float32))
    # Second matmul stays f32 (k is tiny) for closer parity with the f32 module.
    w1_p = jnp.zeros((h_pad, k_pad), jnp.float32).at[:h, :k].set(w1.astype(jnp.float32))
    b1_p = jnp.zeros((1, k_pad), jnp.float32).at[0, :k].set(b1.astype(jnp.float32))
    return dict(w0=w0_p, b0=b0_p, w1=w1_p, b1=b1_p,
                d=d, h=h, k=k, h_pad=h_pad, k_pad=k_pad)


# --------------------------------------------------------------------------
# Forward
# --------------------------------------------------------------------------
def f1_forward(x, params, *, block_n_max=512):
    """out = relu(x @ w0 + b0) @ w1 + b1, fully fused in one Pallas kernel.

    x: (n, d) f32.  params: output of prepare_f1_params.  Returns (n, k) f32.
    """
    n, d = x.shape
    assert d == params["d"], "input feature dim does not match prepared params"
    h_pad, k_pad, k = params["h_pad"], params["k_pad"], params["k"]

    # ----- batch tile sizing -----
    block_n = min(block_n_max, _round_up(n, SUBLANE))
    # Only split the batch for megacore (>=2 TCs) when each half still feeds
    # the MXU with >=256 rows; single-TC v5e/v6e never force a split.
    if _tensorcores_per_chip() >= 2 and n >= 2 * 256:
        block_n = min(block_n, max(256, _round_up(-(-n // 2), SUBLANE)))

    single_buf = _buffered1_supported()
    nbuf_w = 1 if single_buf else 2

    # ----- VMEM budgeting (per-generation, from actual buffer sizes) -----
    vmem_cap = _vmem_capacity_bytes()
    budget = vmem_cap - 8 * 1024 * 1024          # headroom for compiler scratch

    weight_bytes = nbuf_w * (params["w0"].size * 2 + params["w1"].size * 4
                             + params["b0"].size * 4 + params["b1"].size * 4)
    d_pad_est = _round_up(d, LANE)               # VMEM tiles are lane-padded

    def tile_bytes(bn):
        x_tile = bn * d_pad_est * 4 * 2          # f32 x tile, double-buffered
        o_tile = bn * k_pad * 4 * 2              # f32 out tile, double-buffered
        hidden = bn * h_pad * 4 * 2              # f32 intermediate (+ReLU slack)
        return x_tile + o_tile + hidden

    if weight_bytes + tile_bytes(SUBLANE) > budget:
        # TODO(synk): add a contraction/hidden-dim tiled path (extra grid axes
        # over d/h with an f32 VMEM accumulator) for weights exceeding VMEM.
        raise NotImplementedError(
            "F1 resident weights do not fit this TPU's VMEM budget "
            f"({weight_bytes} B weights + minimal tiles > {budget} B).")
    while block_n > SUBLANE and weight_bytes + tile_bytes(block_n) > budget:
        block_n = max(SUBLANE, _round_up(block_n // 2, SUBLANE))

    vmem_limit = int(min(vmem_cap - 4 * 1024 * 1024,
                         max(weight_bytes + 2 * tile_bytes(block_n),
                             32 * 1024 * 1024)))

    w_kwargs = dict(pipeline_mode=pl.Buffered(1)) if single_buf else {}

    call = pl.pallas_call(
        f1_kernel,
        out_shape=jax.ShapeDtypeStruct((n, k_pad), jnp.float32),
        grid_spec=pltpu.PrefetchScalarGridSpec(
            num_scalar_prefetch=0,
            grid=(pl.cdiv(n, block_n),),
            in_specs=[
                pl.BlockSpec((block_n, d), lambda i: (i, 0)),                # x tile (f32)
                pl.BlockSpec((d, h_pad), lambda i: (0, 0), **w_kwargs),      # W0 (bf16, resident)
                pl.BlockSpec((1, h_pad), lambda i: (0, 0), **w_kwargs),      # b0
                pl.BlockSpec((h_pad, k_pad), lambda i: (0, 0), **w_kwargs),  # W1 (f32, resident)
                pl.BlockSpec((1, k_pad), lambda i: (0, 0), **w_kwargs),      # b1
            ],
            out_specs=pl.BlockSpec((block_n, k_pad), lambda i: (i, 0)),
        ),
        compiler_params=pltpu.CompilerParams(
            dimension_semantics=("parallel",),
            vmem_limit_bytes=vmem_limit,
        ),
    )
    out_p = call(x, params["w0"], params["b0"], params["w1"], params["b1"])
    return out_p[:, :k]


def init_f1_params(key, d, h, k):
    """Uniform(-1/sqrt(fan_in), 1/sqrt(fan_in)) init, as in the homework."""
    k0, k1, k2, k3 = jax.random.split(key, 4)
    a0 = 1.0 / jnp.sqrt(jnp.float32(d))
    a1 = 1.0 / jnp.sqrt(jnp.float32(h))
    w0 = jax.random.uniform(k0, (d, h), jnp.float32, -a0, a0)
    b0 = jax.random.uniform(k1, (h,), jnp.float32, -a0, a0)
    w1 = jax.random.uniform(k2, (h, k), jnp.float32, -a1, a1)
    b1 = jax.random.uniform(k3, (k,), jnp.float32, -a1, a1)
    return w0, b0, w1, b1


if __name__ == "__main__":
    # Small shapes consistent with the module: n=8, d=64 features,
    # h=32 hidden units, k=16 classes.
    n, d, h, k = 8, 64, 32, 16
    key = jax.random.PRNGKey(0)
    kx, kp = jax.random.split(key)

    x = jax.random.normal(kx, (n, d), jnp.float32)
    w0, b0, w1, b1 = init_f1_params(kp, d, h, k)

    params = prepare_f1_params(w0, b0, w1, b1)   # one-time prep (hoisted)
    out = f1_forward(x, params)
    out = jax.block_until_ready(out)
    assert out.shape == (n, k)

    # Reference applying the same bf16 rounding the kernel uses on the first
    # matmul's operands (everything else f32).
    xb = x.astype(jnp.bfloat16).astype(jnp.float32)
    w0b = w0.astype(jnp.bfloat16).astype(jnp.float32)
    hid = jnp.maximum(xb @ w0b + b0, 0.0)
    ref_mixed = hid @ w1 + b1
    assert jnp.allclose(out, ref_mixed, atol=2e-2, rtol=2e-2)

    # Loose sanity check against the exact f32 forward pass.
    ref_f32 = jnp.maximum(x @ w0 + b0, 0.0) @ w1 + b1
    assert jnp.allclose(out, ref_f32, atol=1e-1, rtol=1e-1)

    print("KERNEL_OK")
</pallas_src>

<mosaic_0001>
module attributes {stable_mosaic.version = 11 : i64} {
  func.func @_probe_copy_kernel(%arg0: i32, %arg1: memref<8x128xf32, #tpu.memory_space<vmem>>, %arg2: memref<8x128xf32, #tpu.memory_space<vmem>>) attributes {dimension_semantics = [#tpu.dimension_semantics<arbitrary>], iteration_bounds = array<i64: 1>, scalar_prefetch = 0 : i64, scratch_operands = 0 : i64, tpu.core_type = #tpu.core_type<tc>, window_params = [{pipeline_mode = #tpu.pipeline_mode<synchronous>, transform_indices = @transform_0, window_bounds = array<i64: 8, 128>}, {pipeline_mode = #tpu.pipeline_mode<synchronous>, transform_indices = @transform_1, window_bounds = array<i64: 8, 128>}]} {
    %c0 = arith.constant 0 : index
    %c0_0 = arith.constant 0 : index
    %0 = vector.load %arg1[%c0, %c0_0] : memref<8x128xf32, #tpu.memory_space<vmem>>, vector<8x128xf32>
    %c0_1 = arith.constant 0 : index
    %c0_2 = arith.constant 0 : index
    %1 = vector.load %arg2[%c0_1, %c0_2] : memref<8x128xf32, #tpu.memory_space<vmem>>, vector<8x128xf32>
    tpu.vector_store %arg2[%c0_1, %c0_2], %0 {strides = array<i32>} : memref<8x128xf32, #tpu.memory_space<vmem>>, vector<8x128xf32>,
    return
  }
  func.func @transform_0(%arg0: i32) -> (i32, i32) {
    %c0_i32 = arith.constant 0 : i32
    %c0_i32_0 = arith.constant 0 : i32
    %c0_i32_1 = arith.constant 0 : i32
    return %c0_i32, %c0_i32_0 : i32, i32
  }
  func.func @transform_1(%arg0: i32) -> (i32, i32) {
    %c0_i32 = arith.constant 0 : i32
    %c0_i32_0 = arith.constant 0 : i32
    %c0_i32_1 = arith.constant 0 : i32
    return %c0_i32, %c0_i32_0 : i32, i32
  }
}

module attributes {stable_mosaic.version = 11 : i64} {
  func.func @f1_kernel(%arg0: i32, %arg1: memref<8x64xf32, #tpu.memory_space<vmem>>, %arg2: memref<64x128xbf16, #tpu.memory_space<vmem>>, %arg3: memref<1x128xf32, #tpu.memory_space<vmem>>, %arg4: memref<128x128xf32, #tpu.memory_space<vmem>>, %arg5: memref<1x128xf32, #tpu.memory_space<vmem>>, %arg6: memref<8x128xf32, #tpu.memory_space<vmem>>) attributes {dimension_semantics = [#tpu.dimension_semantics<parallel>], iteration_bounds = array<i64: 1>, scalar_prefetch = 0 : i64, scratch_operands = 0 : i64, tpu.core_type = #tpu.core_type<tc>, window_params = [{transform_indices = @transform_0, window_bounds = array<i64: 8, 64>}, {pipeline_mode = #tpu.pipeline_mode<synchronous>, transform_indices = @transform_1, window_bounds = array<i64: 64, 128>}, {pipeline_mode = #tpu.pipeline_mode<synchronous>, transform_indices = @transform_2, window_bounds = array<i64: 1, 128>}, {pipeline_mode = #tpu.pipeline_mode<synchronous>, transform_indices = @transform_3, window_bounds = array<i64: 128, 128>}, {pipeline_mode = #tpu.pipeline_mode<synchronous>, transform_indices = @transform_4, window_bounds = array<i64: 1, 128>}, {transform_indices = @transform_5, window_bounds = array<i64: 8, 128>}]} {
    %c0 = arith.constant 0 : index
    %c0_0 = arith.constant 0 : index
    %0 = vector.load %arg1[%c0, %c0_0] : memref<8x64xf32, #tpu.memory_space<vmem>>, vector<8x64xf32>
    %1 = arith.truncf %0 : vector<8x64xf32> to vector<8x64xbf16>
    %c0_1 = arith.constant 0 : index
    %c0_2 = arith.constant 0 : index
    %2 = vector.load %arg2[%c0_1, %c0_2] : memref<64x128xbf16, #tpu.memory_space<vmem>>, vector<64x128xbf16>
    %cst = arith.constant dense<0.000000e+00> : vector<8x128xf32>
    %3 = tpu.matmul %1, %2, %cst {dimension_numbers = #tpu.dot_dimension_numbers<[1], [0], [0], [1], [0, 0, 1, 1], [], []>} : vector<8x64xbf16>, vector<64x128xbf16>, vector<8x128xf32> -> vector<8x128xf32>
    %c0_3 = arith.constant 0 : index
    %c0_4 = arith.constant 0 : index
    %4 = vector.load %arg3[%c0_3, %c0_4] : memref<1x128xf32, #tpu.memory_space<vmem>>, vector<1x128xf32>
    %5 = vector.broadcast %4 : vector<1x128xf32> to vector<8x128xf32>
    %6 = arith.addf %3, %5 : vector<8x128xf32>
    %cst_5 = arith.constant 0.000000e+00 : f32
    %7 = vector.broadcast %cst_5 : f32 to vector<8x128xf32>
    %8 = arith.maximumf %6, %7 : vector<8x128xf32>
    %c0_6 = arith.constant 0 : index
    %c0_7 = arith.constant 0 : index
    %9 = vector.load %arg4[%c0_6, %c0_7] : memref<128x128xf32, #tpu.memory_space<vmem>>, vector<128x128xf32>
    %cst_8 = arith.constant dense<0.000000e+00> : vector<8x128xf32>
    %10 = tpu.matmul %8, %9, %cst_8 {dimension_numbers = #tpu.dot_dimension_numbers<[1], [0], [0], [1], [0, 0, 1, 1], [], []>} : vector<8x128xf32>, vector<128x128xf32>, vector<8x128xf32> -> vector<8x128xf32>
    %c0_9 = arith.constant 0 : index
    %c0_10 = arith.constant 0 : index
    %11 = vector.load %arg5[%c0_9, %c0_10] : memref<1x128xf32, #tpu.memory_space<vmem>>, vector<1x128xf32>
    %12 = vector.broadcast %11 : vector<1x128xf32> to vector<8x128xf32>
    %13 = arith.addf %10, %12 : vector<8x128xf32>
    %c0_11 = arith.constant 0 : index
    %c0_12 = arith.constant 0 : index
    %14 = vector.load %arg6[%c0_11, %c0_12] : memref<8x128xf32, #tpu.memory_space<vmem>>, vector<8x128xf32>
    tpu.vector_store %arg6[%c0_11, %c0_12], %13 {strides = array<i32>} : memref<8x128xf32, #tpu.memory_space<vmem>>, vector<8x128xf32>,
    return
  }
  func.func @transform_0(%arg0: i32) -> (i32, i32) {
    %c0_i32 = arith.constant 0 : i32
    %c0_i32_0 = arith.constant 0 : i32
    return %arg0, %c0_i32 : i32, i32
  }
  func.func @transform_1(%arg0: i32) -> (i32, i32) {
    %c0_i32 = arith.constant 0 : i32
    %c0_i32_0 = arith.constant 0 : i32
    %c0_i32_1 = arith.constant 0 : i32
    return %c0_i32, %c0_i32_0 : i32, i32
  }
  func.func @transform_2(%arg0: i32) -> (i32, i32) {
    %c0_i32 = arith.constant 0 : i32
    %c0_i32_0 = arith.constant 0 : i32
    %c0_i32_1 = arith.constant 0 : i32
    return %c0_i32, %c0_i32_0 : i32, i32
  }
  func.func @transform_3(%arg0: i32) -> (i32, i32) {
    %c0_i32 = arith.constant 0 : i32
    %c0_i32_0 = arith.constant 0 : i32
    %c0_i32_1 = arith.constant 0 : i32
    return %c0_i32, %c0_i32_0 : i32, i32
  }
  func.func @transform_4(%arg0: i32) -> (i32, i32) {
    %c0_i32 = arith.constant 0 : i32
    %c0_i32_0 = arith.constant 0 : i32
    %c0_i32_1 = arith.constant 0 : i32
    return %c0_i32, %c0_i32_0 : i32, i32
  }
  func.func @transform_5(%arg0: i32) -> (i32, i32) {
    %c0_i32 = arith.constant 0 : i32
    %c0_i32_0 = arith.constant 0 : i32
    return %arg0, %c0_i32 : i32, i32
  }
}

</mosaic_0001>

<llo_original>
// kernel: tpu_custom_call.1
$region0: #{tpu_custom_call.1}
  #allocation0 [shape = 'u32[]', space=smem, size = 0x4, offset = 0x4, fixed_abs, tag = 'smem constant byte address 0x4 - core index']
  #allocation1 [shape = 'u32[72,128]{1,0:T(1,128)}', space=vmem, size = 0x9000, scoped, tag = 'internal scratch']
  %s0 = inlined_call_operand.hbm [shape: f32[8,128], index: 0, kind: input, shape index: {}]
  %s1 = inlined_call_operand.hbm [shape: f32[8,128], index: 1, kind: output, shape index: {}]
  %s2 = sld [smem:[#allocation0]]
  $region18: #{tpu_custom_call.1} parent=0
    _
  %s4 = ssub.s32 1, %s2
  %s5 = scalar_select 0, %s4, %s2
  $region1: #{tpu_custom_call.1} parent=0
    #allocation2 [shape = 'u8[4096]{0}', space=vmem, size = 0x1000, scoped, tag = 'input window, operand 0, single buffered']
    #allocation3 [shape = 's32[1]{0}', space=sflag, size = 0x4, scoped, tag = 'scoped memory for tpu_custom_call.1']
    #allocation4 [shape = 's32[1]{0}', space=sflag, size = 0x4, scoped, tag = 'scoped memory for tpu_custom_call.1']
    #allocation5 [shape = 'u8[4096]{0}', space=vmem, size = 0x1000, scoped, tag = 'output window, operand 0, single buffered']
    %6 = vsyncpa [#allocation3], 0
    %7 = vsyncpa [#allocation4], 0
    // Predicated region
    $region2: #{tpu_custom_call.1} parent=1 // pred_check
      _
    $region3: #{tpu_custom_call.1} parent=1 // pred_check_branch
      %9 = sbr.rel (0) target = $region5
    $region4: #{tpu_custom_call.1} parent=1 // pred_region
      %11 = vsyncadd [#allocation3], 0
      %s13 = sshll.u32 %s0, 4
      %s14 = int_to_ptr.hbm [resolvable:$true] %s13
      %s15 = sshll.u32 [#allocation2], 4
      %s16 = int_to_ptr.vmem [resolvable:$true] %s15
      %18 = dma.hbm_to_vmem [thread:$0]  %s14, 128, %s16, [#allocation3]
    $region5: #{tpu_custom_call.1} parent=1 // pred_fallthru
      _
    // Predicated region
    $region6: #{tpu_custom_call.1} parent=1 // pred_check
      _
    $region7: #{tpu_custom_call.1} parent=1 // pred_check_branch
      %20 = sbr.rel (0) target = $region9
    $region8: #{tpu_custom_call.1} parent=1 // pred_region
      %22 = dma.done [#allocation3], 128
    $region9: #{tpu_custom_call.1} parent=1 // pred_fallthru
      _
    %v23 = vld [vmem:[#allocation2] sm:$0xff]
    %24 = vst [vmem:[#allocation5] sm:$0xff] %v23
    // Predicated region
    $region10: #{tpu_custom_call.1} parent=1 // pred_check
      _
    $region11: #{tpu_custom_call.1} parent=1 // pred_check_branch
      %26 = sbr.rel (0) target = $region13
    $region12: #{tpu_custom_call.1} parent=1 // pred_region
      %28 = vsyncadd [#allocation4], 0
      %s30 = sshll.u32 [#allocation5], 4
      %s31 = int_to_ptr.vmem [resolvable:$true] %s30
      %s32 = sshll.u32 %s1, 4
      %s33 = int_to_ptr.hbm [resolvable:$true] %s32
      %35 = dma.vmem_to_hbm [thread:$0]  %s31, 128, %s33, [#allocation4]
    $region13: #{tpu_custom_call.1} parent=1 // pred_fallthru
      _
    // Predicated region
    $region14: #{tpu_custom_call.1} parent=1 // pred_check
      _
    $region15: #{tpu_custom_call.1} parent=1 // pred_check_branch
      %37 = sbr.rel (0) target = $region17
    $region16: #{tpu_custom_call.1} parent=1 // pred_region
      %39 = dma.done [#allocation4], 128
    $region17: #{tpu_custom_call.1} parent=1 // pred_fallthru
      _
    %40 = vsyncpa [#allocation3], 1
    %41 = vsyncpa [#allocation4], 1

// kernel: tpu_custom_call.1
$region0: #{tpu_custom_call.1}
  #allocation0 [shape = 'u32[]', space=smem, size = 0x4, offset = 0x4, fixed_abs, tag = 'smem constant byte address 0x4 - core index']
  #allocation1 [shape = 'u32[72,128]{1,0:T(1,128)}', space=vmem, size = 0x9000, scoped, tag = 'internal scratch']
  %s0 = inlined_call_operand.hbm [shape: f32[8,64], index: 0, kind: input, shape index: {}]
  %s1 = inlined_call_operand.hbm [shape: bf16[64,128], index: 1, kind: input, shape index: {}]
  %s2 = inlined_call_operand.vmem [shape: f32[1,128], index: 2, kind: input, shape index: {}]
  %s3 = inlined_call_operand.hbm [shape: f32[128,128], index: 3, kind: input, shape index: {}]
  %s4 = inlined_call_operand.vmem [shape: f32[1,128], index: 4, kind: input, shape index: {}]
  %s5 = inlined_call_operand.hbm [shape: f32[8,128], index: 5, kind: output, shape index: {}]
  %s6 = sld [smem:[#allocation0]]
  $region42: #{tpu_custom_call.1} parent=0
    _
  %s8 = ssub.s32 1, %s6
  %s9 = scalar_select 0, %s8, %s6
  $region1: #{tpu_custom_call.1} parent=0
    #allocation2 [shape = 'u8[4096]{0}', space=vmem, size = 0x1000, scoped, tag = 'input window, operand 0, single buffered']
    #allocation3 [shape = 's32[1]{0}', space=sflag, size = 0x4, scoped, tag = 'scoped memory for tpu_custom_call.1']
    #allocation4 [shape = 's32[1]{0}', space=sflag, size = 0x4, scoped, tag = 'scoped memory for tpu_custom_call.1']
    #allocation5 [shape = 'u8[16384]{0}', space=vmem, size = 0x4000, scoped, tag = 'input window, operand 1, single buffered']
    #allocation6 [shape = 's32[1]{0}', space=sflag, size = 0x4, scoped, tag = 'scoped memory for tpu_custom_call.1']
    #allocation7 [shape = 'u8[65536]{0}', space=vmem, size = 0x10000, scoped, tag = 'input window, operand 3, single buffered']
    #allocation8 [shape = 'u8[4096]{0}', space=vmem, size = 0x1000, scoped, tag = 'output window, operand 0, single buffered']
    %10 = vsyncpa [#allocation3], 0
    %11 = vsyncpa [#allocation6], 0
    %12 = vsyncpa [#allocation4], 0
    // Predicated region
    $region2: #{tpu_custom_call.1} parent=1 // pred_check
      _
    $region3: #{tpu_custom_call.1} parent=1 // pred_check_branch
      %14 = sbr.rel (0) target = $region5
    $region4: #{tpu_custom_call.1} parent=1 // pred_region
      %16 = vsyncadd [#allocation3], 0
      %s18 = sshll.u32 %s0, 4
      %s19 = int_to_ptr.hbm [resolvable:$true] %s18
      %s20 = sshll.u32 [#allocation2], 4
      %s21 = int_to_ptr.vmem [resolvable:$true] %s20
      %23 = dma.hbm_to_vmem [thread:$0]  %s19, 128, %s21, [#allocation3]
    $region5: #{tpu_custom_call.1} parent=1 // pred_fallthru
      _
    // Predicated region
    $region6: #{tpu_custom_call.1} parent=1 // pred_check
      _
    $region7: #{tpu_custom_call.1} parent=1 // pred_check_branch
      %25 = sbr.rel (0) target = $region9
    $region8: #{tpu_custom_call.1} parent=1 // pred_region
      %27 = vsyncadd [#allocation6], 0
      %s28 = sshll.u32 %s1, 4
      %s29 = int_to_ptr.hbm [resolvable:$true] %s28
      %s30 = sshll.u32 [#allocation5], 4
      %s31 = int_to_ptr.vmem [resolvable:$true] %s30
      %36 = dma.hbm_to_vmem [thread:$0]  %s29, 512, %s31, [#allocation6], 64, 64, 4
    $region9: #{tpu_custom_call.1} parent=1 // pred_fallthru
      _
    // Predicated region
    $region10: #{tpu_custom_call.1} parent=1 // pred_check
      _
    $region11: #{tpu_custom_call.1} parent=1 // pred_check_branch
      %38 = sbr.rel (0) target = $region13
    $region12: #{tpu_custom_call.1} parent=1 // pred_region
      _
    $region13: #{tpu_custom_call.1} parent=1 // pred_fallthru
      _
    // Predicated region
    $region14: #{tpu_custom_call.1} parent=1 // pred_check
      _
    $region15: #{tpu_custom_call.1} parent=1 // pred_check_branch
      %40 = sbr.rel (0) target = $region17
    $region16: #{tpu_custom_call.1} parent=1 // pred_region
      %42 = vsyncadd [#allocation6], 0
      %s43 = sshll.u32 %s3, 4
      %s44 = int_to_ptr.hbm [resolvable:$true] %s43
      %s45 = sshll.u32 [#allocation7], 4
      %s46 = int_to_ptr.vmem [resolvable:$true] %s45
      %51 = dma.hbm_to_vmem [thread:$0]  %s44, 2048, %s46, [#allocation6], 128, 128, 8
    $region17: #{tpu_custom_call.1} parent=1 // pred_fallthru
      _
    // Predicated region
    $region18: #{tpu_custom_call.1} parent=1 // pred_check
      _
    $region19: #{tpu_custom_call.1} parent=1 // pred_check_branch
      %53 = sbr.rel (0) target = $region21
    $region20: #{tpu_custom_call.1} parent=1 // pred_region
      _
    $region21: #{tpu_custom_call.1} parent=1 // pred_fallthru
      _
    // Predicated region
    $region22: #{tpu_custom_call.1} parent=1 // pred_check
      _
    $region23: #{tpu_custom_call.1} parent=1 // pred_check_branch
      %55 = sbr.rel (0) target = $region25
    $region24: #{tpu_custom_call.1} parent=1 // pred_region
      %57 = dma.done [#allocation3], 128
    $region25: #{tpu_custom_call.1} parent=1 // pred_fallthru
      _
    // Predicated region
    $region26: #{tpu_custom_call.1} parent=1 // pred_check
      _
    $region27: #{tpu_custom_call.1} parent=1 // pred_check_branch
      %59 = sbr.rel (0) target = $region29
    $region28: #{tpu_custom_call.1} parent=1 // pred_region
      %61 = dma.done [#allocation6], 512
    $region29: #{tpu_custom_call.1} parent=1 // pred_fallthru
      _
    // Predicated region
    $region30: #{tpu_custom_call.1} parent=1 // pred_check
      _
    $region31: #{tpu_custom_call.1} parent=1 // pred_check_branch
      %63 = sbr.rel (0) target = $region33
    $region32: #{tpu_custom_call.1} parent=1 // pred_region
      %65 = dma.done [#allocation6], 2048
    $region33: #{tpu_custom_call.1} parent=1 // pred_fallthru
      _
    %v67 = vld [vmem:[#allocation2] sm:$0xff]
    %v68 = vpack.c.bf16 %v67, %v67
    %v69 = vld [vmem:[#allocation5] sm:$0xf]
    %v70 = vld [vmem:[#allocation5 + $0x4] sm:$0xf]
    %v71 = vld [vmem:[#allocation5 + $0x8] sm:$0xf]
    %v72 = vld [vmem:[#allocation5 + $0xc] sm:$0xf]
    %v73 = vld [vmem:[#allocation5 + $0x10] sm:$0xf]
    %v74 = vld [vmem:[#allocation5 + $0x14] sm:$0xf]
    %v75 = vld [vmem:[#allocation5 + $0x18] sm:$0xf]
    %v76 = vld [vmem:[#allocation5 + $0x1c] sm:$0xf]
    %v77 = vld [vmem:[%s2] sm:$0x1]
    %v79 = vperm.slane %v77, 0
    %v89 = vunpack.c.l.b16 %v69
    %v90 = vunpack.c.l.b16 %v70
    %v91 = vunpack.c.l.b16 %v71
    %v92 = vunpack.c.l.b16 %v72
    %v93 = vunpack.c.l.b16 %v73
    %v94 = vunpack.c.l.b16 %v74
    %v95 = vunpack.c.l.b16 %v75
    %v96 = vunpack.c.l.b16 %v76
    %v97 = vpack.c.b16 %v90, %v89
    %v98 = vpack.c.b16 %v92, %v91
    %v99 = vpack.c.b16 %v94, %v93
    %v100 = vpack.c.b16 %v96, %v95
    %vm105 = vcmask 523264
    %v107 = vsel %vm105, %v68, 0
    %109 = vmatpush.bf16.msra.mxu0 0
    %110 = vmatpush.bf16.msra.mxu0 0
    %111 = vmatpush.bf16.msra.mxu0 0
    %112 = vmatpush.bf16.msra.mxu0 0
    %113 = vmatpush.bf16.msra.mxu0 %v100
    %114 = vmatpush.bf16.msra.mxu0 %v99
    %115 = vmatpush.bf16.msra.mxu0 %v98
    %116 = vmatpush.bf16.msra.mxu0 %v97
    %117 = vmatmul.bf16.gmra.mxu0 %v107
    %v118 = vpop.f32.mrf.mxu0
    %v119 = vadd.f32 %v79, %v118
    %v120 = vpop.f32.mrf.mxu0
    %121 = vdwg.mxu0
    %v122 = vmax.f32 %v119, 0.0
    %v123 = vld [vmem:[#allocation7] sm:$0xff]
    %v124 = vld [vmem:[#allocation7 + $0x8] sm:$0xff]
    %v125 = vld [vmem:[#allocation7 + $0x10] sm:$0xff]
    %v126 = vld [vmem:[#allocation7 + $0x18] sm:$0xff]
    %v127 = vld [vmem:[#allocation7 + $0x20] sm:$0xff]
    %v128 = vld [vmem:[#allocation7 + $0x28] sm:$0xff]
    %v129 = vld [vmem:[#allocation7 + $0x30] sm:$0xff]
    %v130 = vld [vmem:[#allocation7 + $0x38] sm:$0xff]
    %v131 = vld [vmem:[#allocation7 + $0x40] sm:$0xff]
    %v132 = vld [vmem:[#allocation7 + $0x48] sm:$0xff]
    %v133 = vld [vmem:[#allocation7 + $0x50] sm:$0xff]
    %v134 = vld [vmem:[#allocation7 + $0x58] sm:$0xff]
    %v135 = vld [vmem:[#allocation7 + $0x60] sm:$0xff]
    %v136 = vld [vmem:[#allocation7 + $0x68] sm:$0xff]
    %v137 = vld [vmem:[#allocation7 + $0x70] sm:$0xff]
    %v138 = vld [vmem:[#allocation7 + $0x78] sm:$0xff]
    %v139 = vld [vmem:[%s4] sm:$0x1]
    %v141 = vperm.slane %v139, 0
    %143 = vmatpush.msra.mxu0 %v138
    %144 = vmatpush.msra.mxu0 %v137
    %145 = vmatpush.msra.mxu0 %v136
    %146 = vmatpush.msra.mxu0 %v135
    %147 = vmatpush.msra.mxu0 %v134
    %148 = vmatpush.msra.mxu0 %v133
    %149 = vmatpush.msra.mxu0 %v132
    %150 = vmatpush.msra.mxu0 %v131
    %151 = vmatpush.msra.mxu0 %v130
    %152 = vmatpush.msra.mxu0 %v129
    %153 = vmatpush.msra.mxu0 %v128
    %154 = vmatpush.msra.mxu0 %v127
    %155 = vmatpush.msra.mxu0 %v126
    %156 = vmatpush.msra.mxu0 %v125
    %157 = vmatpush.msra.mxu0 %v124
    %158 = vmatpush.msra.mxu0 %v123
    %159 = vmatmul.f32.gmra.mxu0 %v122
    %v160 = vpop.f32.mrf.mxu0
    %v161 = vadd.f32 %v141, %v160
    %162 = vdwg.mxu0
    %163 = vst [vmem:[#allocation8] sm:$0xff] %v161
    // Predicated region
    $region34: #{tpu_custom_call.1} parent=1 // pred_check
      _
    $region35: #{tpu_custom_call.1} parent=1 // pred_check_branch
      %165 = sbr.rel (0) target = $region37
    $region36: #{tpu_custom_call.1} parent=1 // pred_region
      %167 = vsyncadd [#allocation4], 0
      %s169 = sshll.u32 [#allocation8], 4
      %s170 = int_to_ptr.vmem [resolvable:$true] %s169
      %s171 = sshll.u32 %s5, 4
      %s172 = int_to_ptr.hbm [resolvable:$true] %s171
      %174 = dma.vmem_to_hbm [thread:$0]  %s170, 128, %s172, [#allocation4]
    $region37: #{tpu_custom_call.1} parent=1 // pred_fallthru
      _
    // Predicated region
    $region38: #{tpu_custom_call.1} parent=1 // pred_check
      _
    $region39: #{tpu_custom_call.1} parent=1 // pred_check_branch
      %176 = sbr.rel (0) target = $region41
    $region40: #{tpu_custom_call.1} parent=1 // pred_region
      %178 = dma.done [#allocation4], 128
    $region41: #{tpu_custom_call.1} parent=1 // pred_fallthru
      _
    %179 = vsyncpa [#allocation3], 1
    %180 = vsyncpa [#allocation6], 1
    %181 = vsyncpa [#allocation4], 1

</llo_original>
